<compile_context>
chip_gen: v5e
topology: v5e:2x2
jax: 0.10.0
libtpu: 0.0.40
codegen_flags: <defaults>
</compile_context>

<pallas_src>
import math
import functools

import jax
import jax.numpy as jnp
from jax import lax
from jax.experimental import pallas as pl
from jax.experimental.pallas import tpu as pltpu

# Above the default scoped-VMEM limits (16 MiB v5e / 32 MiB v6e,v7x), below the
# v7x physical 64 MiB; actual per-step footprints here are a few MiB.
_VMEM_LIMIT_BYTES = 48 * 1024 * 1024


def _pick_sublane_tile(dim, target):
    """Largest divisor of `dim` <= target, preferring multiples of 128 (good when
    the dim later becomes a compute lane axis, e.g. the KV tile), then multiples
    of 8.  Falls back to the full extent (always a legal block size)."""
    if dim <= target:
        return dim
    for align in (128, 8):
        t = (target // align) * align
        while t >= align:
            if dim % t == 0:
                return t
            t -= align
    # TODO(synk): non-8-divisible dims fall back to one full-extent block; pad
    # inputs upstream if this would exceed the VMEM budget on v7x (64 MiB).
    return dim


def _pick_lane_tile(dim, target):
    """Largest multiple-of-128 divisor of `dim` <= target; otherwise the full
    extent (the only other legal lane block size)."""
    if dim <= target:
        return dim
    t = (target // 128) * 128
    while t >= 128:
        if dim % t == 0:
            return t
        t -= 128
    return dim


# --------------------------------------------------------------------------
# Kernel 1: tiled linear projection  y = x @ W + b   (x flattened to (M, Din))
# --------------------------------------------------------------------------
def _linear_kernel(x_ref, w_ref, b_ref, o_ref, acc_ref):
    k = pl.program_id(2)

    @pl.when(k == 0)
    def _():
        acc_ref[...] = jnp.zeros(acc_ref.shape, acc_ref.dtype)

    # bf16 MXU operands, f32 accumulation (casts are no-ops when already bf16).
    acc_ref[...] += jnp.dot(x_ref[...].astype(jnp.bfloat16),
                            w_ref[...].astype(jnp.bfloat16),
                            preferred_element_type=jnp.float32)

    @pl.when(k == pl.num_programs(2) - 1)
    def _():
        o_ref[...] = (acc_ref[...] + b_ref[...]).astype(o_ref.dtype)


def linear(x, w, b, *, out_dtype=None,
           tm_target=512, tn_target=512, tk_target=1024):
    orig_shape = x.shape
    Din = orig_shape[-1]
    Dout = w.shape[1]
    M = math.prod(orig_shape[:-1])
    x2 = x.reshape(M, Din)
    out_dtype = out_dtype or x.dtype

    w_bf = w.astype(jnp.bfloat16)                 # halve weight HBM traffic
    b2 = b.astype(jnp.float32).reshape(1, Dout)   # bias added on the f32 accumulator

    tm = _pick_sublane_tile(M, tm_target)   # sublane dim
    tn = _pick_lane_tile(Dout, tn_target)   # lane dim
    tk = _pick_lane_tile(Din, tk_target)    # lane dim of x block / sublane of w block

    out = pl.pallas_call(
        _linear_kernel,
        out_shape=jax.ShapeDtypeStruct((M, Dout), out_dtype),
        grid=(M // tm, Dout // tn, Din // tk),
        in_specs=[
            pl.BlockSpec((tm, tk), lambda i, j, k: (i, k)),
            pl.BlockSpec((tk, tn), lambda i, j, k: (k, j)),
            pl.BlockSpec((1, tn), lambda i, j, k: (0, j)),
        ],
        out_specs=pl.BlockSpec((tm, tn), lambda i, j, k: (i, j)),
        scratch_shapes=[pltpu.VMEM((tm, tn), jnp.float32)],
        compiler_params=pltpu.CompilerParams(
            dimension_semantics=("parallel", "parallel", "arbitrary"),
            vmem_limit_bytes=_VMEM_LIMIT_BYTES),
    )(x2, w_bf, b2)
    return out.reshape(*orig_shape[:-1], Dout)


# --------------------------------------------------------------------------
# Kernel 2: flash-attention over (B, S, D[.3D]) inputs, all heads per grid step
# --------------------------------------------------------------------------
def _mha_flash_kernel(q_ref, k_ref, v_ref, o_ref, m_sc, l_sc, acc_sc, *,
                      num_heads, head_dim):
    kv = pl.program_id(2)

    @pl.when(kv == 0)
    def _():
        m_sc[...] = jnp.full(m_sc.shape, -jnp.inf, m_sc.dtype)
        l_sc[...] = jnp.zeros(l_sc.shape, l_sc.dtype)
        acc_sc[...] = jnp.zeros(acc_sc.shape, acc_sc.dtype)

    # Per-head online softmax.  Q/K/V arrive as bf16 (MXU-native); statistics
    # and the (tq, D) accumulator stay in f32.  Q scale is folded into wq.
    for h in range(num_heads):
        sl = slice(h * head_dim, (h + 1) * head_dim)
        qh = q_ref[0, :, sl].astype(jnp.bfloat16)      # (tq, hd)
        kh = k_ref[0, :, sl].astype(jnp.bfloat16)      # (tkv, hd)
        vh = v_ref[0, :, sl].astype(jnp.bfloat16)      # (tkv, hd)

        # Q @ K^T via dot_general contracting the last axis of both (no .T copy).
        s = lax.dot_general(qh, kh, (((1,), (1,)), ((), ())),
                            preferred_element_type=jnp.float32)     # (tq, tkv) f32

        m_prev = m_sc[h]                                             # (tq, 1)
        m_new = jnp.maximum(m_prev, jnp.max(s, axis=-1, keepdims=True))
        alpha = jnp.exp(m_prev - m_new)
        p = jnp.exp(s - m_new)                                       # (tq, tkv) f32

        l_sc[h] = alpha * l_sc[h] + jnp.sum(p, axis=-1, keepdims=True)
        pv = jnp.dot(p.astype(jnp.bfloat16), vh,
                     preferred_element_type=jnp.float32)             # (tq, hd) f32
        acc_sc[:, sl] = alpha * acc_sc[:, sl] + pv
        m_sc[h] = m_new
    # TODO(synk): optional `mask` argument of forward() not implemented (mask=None path only).

    @pl.when(kv == pl.num_programs(2) - 1)
    def _():
        tq, D = acc_sc.shape
        # Build a dense (tq, D) softmax denominator (each head's l broadcast over
        # its head_dim column block) so normalization + store are a single
        # full-lane-width op — no per-head sub-128-lane column writes.
        head_of_col = lax.broadcasted_iota(jnp.int32, (tq, D), 1) // head_dim
        l_dense = jnp.zeros((tq, D), jnp.float32)
        for h in range(num_heads):
            l_dense = jnp.where(head_of_col == h,
                                jnp.broadcast_to(l_sc[h], (tq, D)), l_dense)
        inv_l = pl.reciprocal(l_dense, approx=True)       # EUP vrcp
        inv_l = inv_l * (2.0 - l_dense * inv_l)           # one Newton step for accuracy
        o_ref[0] = (acc_sc[...] * inv_l).astype(o_ref.dtype)


def _q_spec(tq, d, col):
    return pl.BlockSpec((1, tq, d), lambda b, qi, ki: (b, qi, col))


def _kv_spec(tkv, d, col):
    return pl.BlockSpec((1, tkv, d), lambda b, qi, ki: (b, ki, col))


def mha_attention(q_arr, k_arr, v_arr, num_heads, *, model_dim,
                  col_blocks=(0, 0, 0), q_tile=256, kv_tile=256,
                  out_dtype=jnp.bfloat16):
    """Flash attention.  q_arr/k_arr/v_arr may be the same (B, S, 3*D) fused-QKV
    buffer (col_blocks=(0,1,2)) or three separate (B, S, D) buffers."""
    B, Sq = q_arr.shape[0], q_arr.shape[1]
    Sk = k_arr.shape[1]
    D = model_dim
    head_dim = D // num_heads

    tq = _pick_sublane_tile(Sq, q_tile)
    tkv = _pick_sublane_tile(Sk, kv_tile)   # prefers 128-multiples (lane dim of scores)

    kern = functools.partial(_mha_flash_kernel, num_heads=num_heads,
                             head_dim=head_dim)
    return pl.pallas_call(
        kern,
        out_shape=jax.ShapeDtypeStruct((B, Sq, D), out_dtype),
        grid=(B, Sq // tq, Sk // tkv),
        in_specs=[
            _q_spec(tq, D, col_blocks[0]),
            _kv_spec(tkv, D, col_blocks[1]),
            _kv_spec(tkv, D, col_blocks[2]),
        ],
        out_specs=pl.BlockSpec((1, tq, D), lambda b, qi, ki: (b, qi, 0)),
        scratch_shapes=[
            pltpu.VMEM((num_heads, tq, 1), jnp.float32),   # running max
            pltpu.VMEM((num_heads, tq, 1), jnp.float32),   # running row-sum
            pltpu.VMEM((tq, D), jnp.float32),              # lane-dense f32 accumulator
        ],
        compiler_params=pltpu.CompilerParams(
            dimension_semantics=("parallel", "parallel", "arbitrary"),
            vmem_limit_bytes=_VMEM_LIMIT_BYTES),
    )(q_arr, k_arr, v_arr)


# --------------------------------------------------------------------------
# Full MultiHeadAttention forward (mask=None, eval-mode dropout = identity)
# --------------------------------------------------------------------------
def multi_head_attention(query, key, value, params, num_heads,
                         *, q_tile=256, kv_tile=256):
    D = query.shape[-1]
    assert D % num_heads == 0, "model_dim must be divisible by num_heads"
    head_dim = D // num_heads
    scale = 1.0 / math.sqrt(head_dim)

    # Fold 1/sqrt(head_dim) into the Q projection (hoisted out of the kernel).
    wq_w = params["wq_w"] * scale
    wq_b = params["wq_b"] * scale
    compute_dtype = jnp.bfloat16

    fuse_qkv = (query is key) and (key is value) and (D % 128 == 0)
    if fuse_qkv:
        # One (D, 3D) projection; attention reads Q/K/V as column-offset views
        # of the fused (B, S, 3D) buffer (no XLA slices, x read from HBM once).
        w_qkv = jnp.concatenate([wq_w, params["wk_w"], params["wv_w"]], axis=1)
        b_qkv = jnp.concatenate([wq_b, params["wk_b"], params["wv_b"]], axis=0)
        qkv = linear(query, w_qkv, b_qkv, out_dtype=compute_dtype)   # (B, S, 3D)
        O = mha_attention(qkv, qkv, qkv, num_heads, model_dim=D,
                          col_blocks=(0, 1, 2), q_tile=q_tile, kv_tile=kv_tile,
                          out_dtype=compute_dtype)
    else:
        Q = linear(query, wq_w, wq_b, out_dtype=compute_dtype)        # (B, Sq, D)
        K = linear(key, params["wk_w"], params["wk_b"], out_dtype=compute_dtype)
        V = linear(value, params["wv_w"], params["wv_b"], out_dtype=compute_dtype)
        O = mha_attention(Q, K, V, num_heads, model_dim=D,
                          col_blocks=(0, 0, 0), q_tile=q_tile, kv_tile=kv_tile,
                          out_dtype=compute_dtype)

    out = linear(O, params["fc_w"], params["fc_b"], out_dtype=query.dtype)
    # TODO(synk): nn.Dropout is identity in eval mode; training-mode dropout not implemented.
    return out


# --------------------------------------------------------------------------
# Pure-JAX f32 reference (for correctness check)
# --------------------------------------------------------------------------
def reference(query, key, value, params, num_heads):
    B, Sq, D = query.shape
    Sk = key.shape[1]
    hd = D // num_heads
    Q = query @ params["wq_w"] + params["wq_b"]
    K = key @ params["wk_w"] + params["wk_b"]
    V = value @ params["wv_w"] + params["wv_b"]
    Q = Q.reshape(B, Sq, num_heads, hd).transpose(0, 2, 1, 3)
    K = K.reshape(B, Sk, num_heads, hd).transpose(0, 2, 1, 3)
    V = V.reshape(B, Sk, num_heads, hd).transpose(0, 2, 1, 3)
    energy = jnp.einsum("bhqd,bhkd->bhqk", Q, K) / math.sqrt(hd)
    attn = jax.nn.softmax(energy, axis=-1)
    x = jnp.einsum("bhqk,bhkd->bhqd", attn, V)
    x = x.transpose(0, 2, 1, 3).reshape(B, Sq, D)
    return x @ params["fc_w"] + params["fc_b"]


if __name__ == "__main__":
    key0 = jax.random.PRNGKey(0)

    def winit(k, din, dout):
        bound = 1.0 / math.sqrt(din)
        return jax.random.uniform(k, (din, dout), jnp.float32, -bound, bound)

    def binit(k, din, dout):
        bound = 1.0 / math.sqrt(din)
        return jax.random.uniform(k, (dout,), jnp.float32, -bound, bound)

    def make_params(key, D):
        ks = jax.random.split(key, 8)
        return {
            "wq_w": winit(ks[0], D, D), "wq_b": binit(ks[1], D, D),
            "wk_w": winit(ks[2], D, D), "wk_b": binit(ks[3], D, D),
            "wv_w": winit(ks[4], D, D), "wv_b": binit(ks[5], D, D),
            "fc_w": winit(ks[6], D, D), "fc_b": binit(ks[7], D, D),
        }

    # bf16 MXU operands vs f32 reference -> widened tolerance.
    TOL = dict(atol=5e-2, rtol=5e-2)
    k_case1, k_case2 = jax.random.split(key0)

    # 1) self-attention, model_dim=128 (exercises the fused-QKV / offset-BlockSpec path)
    B, S, D, H = 2, 8, 128, 4
    p1 = make_params(k_case1, D)
    x = jax.random.normal(jax.random.fold_in(k_case1, 99), (B, S, D), jnp.float32)
    out1 = jax.block_until_ready(multi_head_attention(x, x, x, p1, H))
    ref1 = reference(x, x, x, p1, H)
    assert out1.shape == (B, S, D)
    assert jnp.allclose(out1, ref1, **TOL), "self-attn (fused QKV) mismatch vs reference"

    # 2) cross-attention, model_dim=32, Sk != Sq, kv_tile=8 -> two KV grid steps
    #    (exercises the online-softmax accumulation and the unfused path)
    B, Sq, Sk, D, H = 2, 8, 16, 32, 4
    p2 = make_params(k_case2, D)
    kq, kk, kv_ = jax.random.split(jax.random.fold_in(k_case2, 7), 3)
    q_in = jax.random.normal(kq, (B, Sq, D), jnp.float32)
    k_in = jax.random.normal(kk, (B, Sk, D), jnp.float32)
    v_in = jax.random.normal(kv_, (B, Sk, D), jnp.float32)
    out2 = jax.block_until_ready(
        multi_head_attention(q_in, k_in, v_in, p2, H, q_tile=8, kv_tile=8))
    ref2 = reference(q_in, k_in, v_in, p2, H)
    assert out2.shape == (B, Sq, D)
    assert jnp.allclose(out2, ref2, **TOL), "cross-attn mismatch vs reference"

    print("KERNEL_OK")
</pallas_src>

<mosaic_0001>
module attributes {stable_mosaic.version = 11 : i64} {
  func.func @_linear_kernel(%arg0: i32, %arg1: i32, %arg2: i32, %arg3: memref<16x128xf32, #tpu.memory_space<vmem>>, %arg4: memref<128x384xbf16, #tpu.memory_space<vmem>>, %arg5: memref<1x384xf32, #tpu.memory_space<vmem>>, %arg6: memref<16x384xbf16, #tpu.memory_space<vmem>>, %arg7: memref<16x384xf32, #tpu.memory_space<vmem>>) attributes {dimension_semantics = [#tpu.dimension_semantics<parallel>, #tpu.dimension_semantics<parallel>, #tpu.dimension_semantics<arbitrary>], iteration_bounds = array<i64: 1, 1, 1>, scalar_prefetch = 0 : i64, scratch_operands = 1 : i64, tpu.core_type = #tpu.core_type<tc>, window_params = [{transform_indices = @transform_0, window_bounds = array<i64: 16, 128>}, {transform_indices = @transform_1, window_bounds = array<i64: 128, 384>}, {transform_indices = @transform_2, window_bounds = array<i64: 1, 384>}, {transform_indices = @transform_3, window_bounds = array<i64: 16, 384>}]} {
    %c0_i32 = arith.constant 0 : i32
    %0 = arith.cmpi eq, %arg2, %c0_i32 : i32
    %1 = arith.extui %0 : i1 to i32
    %c0_i32_0 = arith.constant 0 : i32
    %2 = arith.cmpi ne, %1, %c0_i32_0 : i32
    scf.if %2 {
      %cst_10 = arith.constant 0.000000e+00 : f32
      %13 = vector.broadcast %cst_10 : f32 to vector<16x384xf32>
      %c0_11 = arith.constant 0 : index
      %c0_12 = arith.constant 0 : index
      %14 = vector.load %arg7[%c0_11, %c0_12] : memref<16x384xf32, #tpu.memory_space<vmem>>, vector<16x384xf32>
      tpu.vector_store %arg7[%c0_11, %c0_12], %13 {strides = array<i32>} : memref<16x384xf32, #tpu.memory_space<vmem>>, vector<16x384xf32>,
    } else {
    }
    %c0 = arith.constant 0 : index
    %c0_1 = arith.constant 0 : index
    %3 = vector.load %arg7[%c0, %c0_1] : memref<16x384xf32, #tpu.memory_space<vmem>>, vector<16x384xf32>
    %c0_2 = arith.constant 0 : index
    %c0_3 = arith.constant 0 : index
    %4 = vector.load %arg3[%c0_2, %c0_3] : memref<16x128xf32, #tpu.memory_space<vmem>>, vector<16x128xf32>
    %5 = arith.truncf %4 : vector<16x128xf32> to vector<16x128xbf16>
    %c0_4 = arith.constant 0 : index
    %c0_5 = arith.constant 0 : index
    %6 = vector.load %arg4[%c0_4, %c0_5] : memref<128x384xbf16, #tpu.memory_space<vmem>>, vector<128x384xbf16>
    %cst = arith.constant dense<0.000000e+00> : vector<16x384xf32>
    %7 = tpu.matmul %5, %6, %cst {dimension_numbers = #tpu.dot_dimension_numbers<[1], [0], [0], [1], [0, 0, 1, 1], [], []>} : vector<16x128xbf16>, vector<128x384xbf16>, vector<16x384xf32> -> vector<16x384xf32>
    %8 = arith.addf %3, %7 : vector<16x384xf32>
    %c0_6 = arith.constant 0 : index
    %c0_7 = arith.constant 0 : index
    %9 = vector.load %arg7[%c0_6, %c0_7] : memref<16x384xf32, #tpu.memory_space<vmem>>, vector<16x384xf32>
    tpu.vector_store %arg7[%c0_6, %c0_7], %8 {strides = array<i32>} : memref<16x384xf32, #tpu.memory_space<vmem>>, vector<16x384xf32>,
    %c0_i32_8 = arith.constant 0 : i32
    %10 = arith.cmpi eq, %arg2, %c0_i32_8 : i32
    %11 = arith.extui %10 : i1 to i32
    %c0_i32_9 = arith.constant 0 : i32
    %12 = arith.cmpi ne, %11, %c0_i32_9 : i32
    scf.if %12 {
      %c0_10 = arith.constant 0 : index
      %c0_11 = arith.constant 0 : index
      %13 = vector.load %arg7[%c0_10, %c0_11] : memref<16x384xf32, #tpu.memory_space<vmem>>, vector<16x384xf32>
      %c0_12 = arith.constant 0 : index
      %c0_13 = arith.constant 0 : index
      %14 = vector.load %arg5[%c0_12, %c0_13] : memref<1x384xf32, #tpu.memory_space<vmem>>, vector<1x384xf32>
      %15 = vector.broadcast %14 : vector<1x384xf32> to vector<16x384xf32>
      %16 = arith.addf %13, %15 : vector<16x384xf32>
      %17 = arith.truncf %16 : vector<16x384xf32> to vector<16x384xbf16>
      %c0_14 = arith.constant 0 : index
      %c0_15 = arith.constant 0 : index
      %18 = vector.load %arg6[%c0_14, %c0_15] : memref<16x384xbf16, #tpu.memory_space<vmem>>, vector<16x384xbf16>
      tpu.vector_store %arg6[%c0_14, %c0_15], %17 {strides = array<i32>} : memref<16x384xbf16, #tpu.memory_space<vmem>>, vector<16x384xbf16>,
    } else {
    }
    return
  }
  func.func @transform_0(%arg0: i32, %arg1: i32, %arg2: i32) -> (i32, i32) {
    %c0_i32 = arith.constant 0 : i32
    return %arg0, %arg2 : i32, i32
  }
  func.func @transform_1(%arg0: i32, %arg1: i32, %arg2: i32) -> (i32, i32) {
    %c0_i32 = arith.constant 0 : i32
    return %arg2, %arg1 : i32, i32
  }
  func.func @transform_2(%arg0: i32, %arg1: i32, %arg2: i32) -> (i32, i32) {
    %c0_i32 = arith.constant 0 : i32
    %c0_i32_0 = arith.constant 0 : i32
    return %c0_i32, %arg1 : i32, i32
  }
  func.func @transform_3(%arg0: i32, %arg1: i32, %arg2: i32) -> (i32, i32) {
    %c0_i32 = arith.constant 0 : i32
    return %arg0, %arg1 : i32, i32
  }
}

</mosaic_0001>

<llo_original>
// kernel: tpu_custom_call.1
$region0: #{tpu_custom_call.1}
  #allocation0 [shape = 'u32[]', space=smem, size = 0x4, offset = 0x4, fixed_abs, tag = 'smem constant byte address 0x4 - core index']
  #allocation1 [shape = 'u32[72,128]{1,0:T(1,128)}', space=vmem, size = 0x9000, scoped, tag = 'internal scratch']
  #allocation2 [shape = 'f32[16,384]{1,0:T(8,128)}', space=vmem, size = 0x6000, scoped, tag = 'scratch operand']
  %s0 = inlined_call_operand.hbm [shape: f32[16,128], index: 0, kind: input, shape index: {}]
  %s1 = inlined_call_operand.hbm [shape: bf16[128,384], index: 1, kind: input, shape index: {}]
  %s2 = inlined_call_operand.hbm [shape: f32[1,384], index: 2, kind: input, shape index: {}]
  %s3 = inlined_call_operand.hbm [shape: bf16[16,384], index: 3, kind: output, shape index: {}]
  %s4 = sld [smem:[#allocation0]]
  $region42: #{tpu_custom_call.1} parent=0
    _
  %s6 = ssub.s32 1, %s4
  %s7 = scalar_select 0, %s6, %s4
  $region1: #{tpu_custom_call.1} parent=0
    #allocation3 [shape = 'u8[8192]{0}', space=vmem, size = 0x2000, scoped, tag = 'input window, operand 0, single buffered']
    #allocation4 [shape = 's32[1]{0}', space=sflag, size = 0x4, scoped, tag = 'scoped memory for tpu_custom_call.1']
    #allocation5 [shape = 's32[1]{0}', space=sflag, size = 0x4, scoped, tag = 'scoped memory for tpu_custom_call.1']
    #allocation6 [shape = 'u8[98304]{0}', space=vmem, size = 0x18000, scoped, tag = 'input window, operand 1, single buffered']
    #allocation7 [shape = 's32[1]{0}', space=sflag, size = 0x4, scoped, tag = 'scoped memory for tpu_custom_call.1']
    #allocation8 [shape = 'u8[1536]{0}', space=vmem, size = 0x800, scoped, tag = 'input window, operand 2, single buffered']
    #allocation9 [shape = 'u8[12288]{0}', space=vmem, size = 0x3000, scoped, tag = 'output window, operand 0, single buffered']
    %8 = vsyncpa [#allocation4], 0
    %9 = vsyncpa [#allocation7], 0
    %10 = vsyncpa [#allocation5], 0
    // Predicated region
    $region2: #{tpu_custom_call.1} parent=1 // pred_check
      _
    $region3: #{tpu_custom_call.1} parent=1 // pred_check_branch
      %12 = sbr.rel (0) target = $region5
    $region4: #{tpu_custom_call.1} parent=1 // pred_region
      %14 = vsyncadd [#allocation4], 0
      %s15 = sshll.u32 %s0, 4
      %s16 = int_to_ptr.hbm [resolvable:$true] %s15
      %s17 = sshll.u32 [#allocation3], 4
      %s18 = int_to_ptr.vmem [resolvable:$true] %s17
      %23 = dma.hbm_to_vmem [thread:$0]  %s16, 256, %s18, [#allocation4], 128, 128, 8
    $region5: #{tpu_custom_call.1} parent=1 // pred_fallthru
      _
    // Predicated region
    $region6: #{tpu_custom_call.1} parent=1 // pred_check
      _
    $region7: #{tpu_custom_call.1} parent=1 // pred_check_branch
      %25 = sbr.rel (0) target = $region9
    $region8: #{tpu_custom_call.1} parent=1 // pred_region
      %27 = vsyncadd [#allocation7], 0
      %s28 = sshll.u32 %s1, 4
      %s29 = int_to_ptr.hbm [resolvable:$true] %s28
      %s30 = sshll.u32 [#allocation6], 4
      %s31 = int_to_ptr.vmem [resolvable:$true] %s30
      %36 = dma.hbm_to_vmem [thread:$0]  %s29, 3072, %s31, [#allocation7], 192, 192, 12
    $region9: #{tpu_custom_call.1} parent=1 // pred_fallthru
      _
    // Predicated region
    $region10: #{tpu_custom_call.1} parent=1 // pred_check
      _
    $region11: #{tpu_custom_call.1} parent=1 // pred_check_branch
      %38 = sbr.rel (0) target = $region13
    $region12: #{tpu_custom_call.1} parent=1 // pred_region
      %40 = vsyncadd [#allocation7], 0
      %s42 = sshll.u32 %s2, 4
      %s43 = int_to_ptr.hbm [resolvable:$true] %s42
      %s44 = sshll.u32 [#allocation8], 4
      %s45 = int_to_ptr.vmem [resolvable:$true] %s44
      %47 = dma.hbm_to_vmem [thread:$0]  %s43, 48, %s45, [#allocation7]
    $region13: #{tpu_custom_call.1} parent=1 // pred_fallthru
      _
    // Predicated region
    $region14: #{tpu_custom_call.1} parent=1 // pred_check
      _
    $region15: #{tpu_custom_call.1} parent=1 // pred_check_branch
      %49 = sbr.rel (0) target = $region17
    $region16: #{tpu_custom_call.1} parent=1 // pred_region
      %51 = dma.done [#allocation4], 256
    $region17: #{tpu_custom_call.1} parent=1 // pred_fallthru
      _
    // Predicated region
    $region18: #{tpu_custom_call.1} parent=1 // pred_check
      _
    $region19: #{tpu_custom_call.1} parent=1 // pred_check_branch
      %53 = sbr.rel (0) target = $region21
    $region20: #{tpu_custom_call.1} parent=1 // pred_region
      %55 = dma.done [#allocation7], 3072
    $region21: #{tpu_custom_call.1} parent=1 // pred_fallthru
      _
    // Predicated region
    $region22: #{tpu_custom_call.1} parent=1 // pred_check
      _
    $region23: #{tpu_custom_call.1} parent=1 // pred_check_branch
      %57 = sbr.rel (0) target = $region25
    $region24: #{tpu_custom_call.1} parent=1 // pred_region
      %59 = dma.done [#allocation7], 48
    $region25: #{tpu_custom_call.1} parent=1 // pred_fallthru
      _
    %p60 = scmp.eq.s32.totalorder 0, 0
    // Predicated region
    $region26: #{tpu_custom_call.1} parent=1 // pred_check
      %p61 = pneg %p60
    $region27: #{tpu_custom_call.1} parent=1 // pred_check_branch
      %63 = sbr.rel (%p61) target = $region29
    $region28: #{tpu_custom_call.1} parent=1 // pred_region
      %64 = vst [vmem:[#allocation2] sm:$0xff] 0.0
      %65 = vst [vmem:[#allocation2 + $0x8] sm:$0xff] 0.0
      %66 = vst [vmem:[#allocation2 + $0x10] sm:$0xff] 0.0
      %67 = vst [vmem:[#allocation2 + $0x18] sm:$0xff] 0.0
      %68 = vst [vmem:[#allocation2 + $0x20] sm:$0xff] 0.0
      %69 = vst [vmem:[#allocation2 + $0x28] sm:$0xff] 0.0
    $region29: #{tpu_custom_call.1} parent=1 // pred_fallthru
      _
    %v70 = vld [vmem:[#allocation2] sm:$0xff]
    %v71 = vld [vmem:[#allocation2 + $0x8] sm:$0xff]
    %v72 = vld [vmem:[#allocation2 + $0x10] sm:$0xff]
    %v73 = vld [vmem:[#allocation2 + $0x18] sm:$0xff]
    %v74 = vld [vmem:[#allocation2 + $0x20] sm:$0xff]
    %v75 = vld [vmem:[#allocation2 + $0x28] sm:$0xff]
    %v76 = vld [vmem:[#allocation3] sm:$0xff]
    %v77 = vld [vmem:[#allocation3 + $0x8] sm:$0xff]
    %v78 = vpack.c.bf16 %v77, %v76
    %v79 = vld [vmem:[#allocation6] sm:$0xff]
    %v80 = vld [vmem:[#allocation6 + $0x8] sm:$0xf]
    %v81 = vld [vmem:[#allocation6 + $0xc] sm:$0xff]
    %v82 = vld [vmem:[#allocation6 + $0x14] sm:$0xf]
    %v83 = vld [vmem:[#allocation6 + $0x18] sm:$0xff]
    %v84 = vld [vmem:[#allocation6 + $0x20] sm:$0xf]
    %v85 = vld [vmem:[#allocation6 + $0x24] sm:$0xff]
    %v86 = vld [vmem:[#allocation6 + $0x2c] sm:$0xf]
    %v87 = vld [vmem:[#allocation6 + $0x30] sm:$0xff]
    %v88 = vld [vmem:[#allocation6 + $0x38] sm:$0xf]
    %v89 = vld [vmem:[#allocation6 + $0x3c] sm:$0xff]
    %v90 = vld [vmem:[#allocation6 + $0x44] sm:$0xf]
    %v91 = vld [vmem:[#allocation6 + $0x48] sm:$0xff]
    %v92 = vld [vmem:[#allocation6 + $0x50] sm:$0xf]
    %v93 = vld [vmem:[#allocation6 + $0x54] sm:$0xff]
    %v94 = vld [vmem:[#allocation6 + $0x5c] sm:$0xf]
    %v95 = vld [vmem:[#allocation6 + $0x60] sm:$0xff]
    %v96 = vld [vmem:[#allocation6 + $0x68] sm:$0xf]
    %v97 = vld [vmem:[#allocation6 + $0x6c] sm:$0xff]
    %v98 = vld [vmem:[#allocation6 + $0x74] sm:$0xf]
    %v99 = vld [vmem:[#allocation6 + $0x78] sm:$0xff]
    %v100 = vld [vmem:[#allocation6 + $0x80] sm:$0xf]
    %v101 = vld [vmem:[#allocation6 + $0x84] sm:$0xff]
    %v102 = vld [vmem:[#allocation6 + $0x8c] sm:$0xf]
    %v103 = vld [vmem:[#allocation6 + $0x90] sm:$0xff]
    %v104 = vld [vmem:[#allocation6 + $0x98] sm:$0xf]
    %v105 = vld [vmem:[#allocation6 + $0x9c] sm:$0xff]
    %v106 = vld [vmem:[#allocation6 + $0xa4] sm:$0xf]
    %v107 = vld [vmem:[#allocation6 + $0xa8] sm:$0xff]
    %v108 = vld [vmem:[#allocation6 + $0xb0] sm:$0xf]
    %v109 = vld [vmem:[#allocation6 + $0xb4] sm:$0xff]
    %v110 = vld [vmem:[#allocation6 + $0xbc] sm:$0xf]
    %v143 = vunpack.c.l.b16 %v79
    %v144 = vunpack.c.h.b16 %v79
    %v145 = vunpack.c.l.b16 %v80
    %v146 = vunpack.c.l.b16 %v81
    %v147 = vunpack.c.h.b16 %v81
    %v148 = vunpack.c.l.b16 %v82
    %v149 = vunpack.c.l.b16 %v83
    %v150 = vunpack.c.h.b16 %v83
    %v151 = vunpack.c.l.b16 %v84
    %v152 = vunpack.c.l.b16 %v85
    %v153 = vunpack.c.h.b16 %v85
    %v154 = vunpack.c.l.b16 %v86
    %v155 = vunpack.c.l.b16 %v87
    %v156 = vunpack.c.h.b16 %v87
    %v157 = vunpack.c.l.b16 %v88
    %v158 = vunpack.c.l.b16 %v89
    %v159 = vunpack.c.h.b16 %v89
    %v160 = vunpack.c.l.b16 %v90
    %v161 = vunpack.c.l.b16 %v91
    %v162 = vunpack.c.h.b16 %v91
    %v163 = vunpack.c.l.b16 %v92
    %v164 = vunpack.c.l.b16 %v93
    %v165 = vunpack.c.h.b16 %v93
    %v166 = vunpack.c.l.b16 %v94
    %v167 = vunpack.c.l.b16 %v95
    %v168 = vunpack.c.h.b16 %v95
    %v169 = vunpack.c.l.b16 %v96
    %v170 = vunpack.c.l.b16 %v97
    %v171 = vunpack.c.h.b16 %v97
    %v172 = vunpack.c.l.b16 %v98
    %v173 = vunpack.c.l.b16 %v99
    %v174 = vunpack.c.h.b16 %v99
    %v175 = vunpack.c.l.b16 %v100
    %v176 = vunpack.c.l.b16 %v101
    %v177 = vunpack.c.h.b16 %v101
    %v178 = vunpack.c.l.b16 %v102
    %v179 = vunpack.c.l.b16 %v103
    %v180 = vunpack.c.h.b16 %v103
    %v181 = vunpack.c.l.b16 %v104
    %v182 = vunpack.c.l.b16 %v105
    %v183 = vunpack.c.h.b16 %v105
    %v184 = vunpack.c.l.b16 %v106
    %v185 = vunpack.c.l.b16 %v107
    %v186 = vunpack.c.h.b16 %v107
    %v187 = vunpack.c.l.b16 %v108
    %v188 = vunpack.c.l.b16 %v109
    %v189 = vunpack.c.h.b16 %v109
    %v190 = vunpack.c.l.b16 %v110
    %v191 = vpack.c.b16 %v146, %v143
    %v192 = vpack.c.b16 %v147, %v144
    %v193 = vpack.c.b16 %v148, %v145
    %v194 = vpack.c.b16 %v152, %v149
    %v195 = vpack.c.b16 %v153, %v150
    %v196 = vpack.c.b16 %v154, %v151
    %v197 = vpack.c.b16 %v158, %v155
    %v198 = vpack.c.b16 %v159, %v156
    %v199 = vpack.c.b16 %v160, %v157
    %v200 = vpack.c.b16 %v164, %v161
    %v201 = vpack.c.b16 %v165, %v162
    %v202 = vpack.c.b16 %v166, %v163
    %v203 = vpack.c.b16 %v170, %v167
    %v204 = vpack.c.b16 %v171, %v168
    %v205 = vpack.c.b16 %v172, %v169
    %v206 = vpack.c.b16 %v176, %v173
    %v207 = vpack.c.b16 %v177, %v174
    %v208 = vpack.c.b16 %v178, %v175
    %v209 = vpack.c.b16 %v182, %v179
    %v210 = vpack.c.b16 %v183, %v180
    %v211 = vpack.c.b16 %v184, %v181
    %v212 = vpack.c.b16 %v188, %v185
    %v213 = vpack.c.b16 %v189, %v186
    %v214 = vpack.c.b16 %v190, %v187
    %239 = vmatpush.bf16.msra.mxu0 %v212
    %240 = vmatpush.bf16.msra.mxu0 %v209
    %241 = vmatpush.bf16.msra.mxu0 %v206
    %242 = vmatpush.bf16.msra.mxu0 %v203
    %243 = vmatpush.bf16.msra.mxu0 %v200
    %244 = vmatpush.bf16.msra.mxu0 %v197
    %245 = vmatpush.bf16.msra.mxu0 %v194
    %246 = vmatpush.bf16.msra.mxu0 %v191
    %247 = vmatmul.bf16.gmra.mxu0 %v78
    %v248 = vpop.f32.mrf.mxu0
    %v249 = vadd.f32 0.0, %v248
    %v250 = vpop.f32.mrf.mxu0
    %v251 = vadd.f32 0.0, %v250
    %252 = vdwg.mxu0
    %253 = vmatpush.bf16.msra.mxu0 %v213
    %254 = vmatpush.bf16.msra.mxu0 %v210
    %255 = vmatpush.bf16.msra.mxu0 %v207
    %256 = vmatpush.bf16.msra.mxu0 %v204
    %257 = vmatpush.bf16.msra.mxu0 %v201
    %258 = vmatpush.bf16.msra.mxu0 %v198
    %259 = vmatpush.bf16.msra.mxu0 %v195
    %260 = vmatpush.bf16.msra.mxu0 %v192
    %261 = vmatmul.bf16.gmra.mxu0 %v78
    %v262 = vpop.f32.mrf.mxu0
    %v263 = vadd.f32 0.0, %v262
    %v264 = vpop.f32.mrf.mxu0
    %v265 = vadd.f32 0.0, %v264
    %266 = vdwg.mxu0
    %267 = vmatpush.bf16.msra.mxu0 %v214
    %268 = vmatpush.bf16.msra.mxu0 %v211
    %269 = vmatpush.bf16.msra.mxu0 %v208
    %270 = vmatpush.bf16.msra.mxu0 %v205
    %271 = vmatpush.bf16.msra.mxu0 %v202
    %272 = vmatpush.bf16.msra.mxu0 %v199
    %273 = vmatpush.bf16.msra.mxu0 %v196
    %274 = vmatpush.bf16.msra.mxu0 %v193
    %275 = vmatmul.bf16.gmra.mxu0 %v78
    %v276 = vpop.f32.mrf.mxu0
    %v277 = vadd.f32 0.0, %v276
    %v278 = vpop.f32.mrf.mxu0
    %v279 = vadd.f32 0.0, %v278
    %280 = vdwg.mxu0
    %v281 = vadd.f32 %v70, %v249
    %v282 = vadd.f32 %v71, %v263
    %v283 = vadd.f32 %v72, %v277
    %v284 = vadd.f32 %v73, %v251
    %v285 = vadd.f32 %v74, %v265
    %v286 = vadd.f32 %v75, %v279
    %287 = vst [vmem:[#allocation2] sm:$0xff] %v281
    %288 = vst [vmem:[#allocation2 + $0x8] sm:$0xff] %v282
    %289 = vst [vmem:[#allocation2 + $0x10] sm:$0xff] %v283
    %290 = vst [vmem:[#allocation2 + $0x18] sm:$0xff] %v284
    %291 = vst [vmem:[#allocation2 + $0x20] sm:$0xff] %v285
    %292 = vst [vmem:[#allocation2 + $0x28] sm:$0xff] %v286
    // Predicated region
    $region30: #{tpu_custom_call.1} parent=1 // pred_check
      %p293 = pneg %p60
    $region31: #{tpu_custom_call.1} parent=1 // pred_check_branch
      %295 = sbr.rel (%p293) target = $region33
    $region32: #{tpu_custom_call.1} parent=1 // pred_region
      %v296 = vld [vmem:[#allocation2] sm:$0xff]
      %v297 = vld [vmem:[#allocation2 + $0x8] sm:$0xff]
      %v298 = vld [vmem:[#allocation2 + $0x10] sm:$0xff]
      %v299 = vld [vmem:[#allocation2 + $0x18] sm:$0xff]
      %v300 = vld [vmem:[#allocation2 + $0x20] sm:$0xff]
      %v301 = vld [vmem:[#allocation2 + $0x28] sm:$0xff]
      %v302 = vld [vmem:[#allocation8] sm:$0x7]
      %v304 = vperm.slane %v302, 0
      %v305 = vperm.slane %v302, 1
      %v306 = vperm.slane %v302, 2
      %v310 = vadd.f32 %v296, %v304
      %v311 = vadd.f32 %v297, %v305
      %v312 = vadd.f32 %v298, %v306
      %v313 = vadd.f32 %v299, %v304
      %v314 = vadd.f32 %v300, %v305
      %v315 = vadd.f32 %v301, %v306
      %v316 = vpack.c.bf16 %v311, %v310
      %v317 = vpack.c.bf16 %v312, %v312
      %v318 = vpack.c.bf16 %v314, %v313
      %v319 = vpack.c.bf16 %v315, %v315
      %320 = vst [vmem:[#allocation9] sm:$0xff] %v316
      %321 = vst [vmem:[#allocation9 + $0x8] sm:$0xf] %v317
      %322 = vst [vmem:[#allocation9 + $0xc] sm:$0xff] %v318
      %323 = vst [vmem:[#allocation9 + $0x14] sm:$0xf] %v319
    $region33: #{tpu_custom_call.1} parent=1 // pred_fallthru
      _
    // Predicated region
    $region34: #{tpu_custom_call.1} parent=1 // pred_check
      _
    $region35: #{tpu_custom_call.1} parent=1 // pred_check_branch
      %325 = sbr.rel (0) target = $region37
    $region36: #{tpu_custom_call.1} parent=1 // pred_region
      %327 = vsyncadd [#allocation5], 0
      %s328 = sshll.u32 [#allocation9], 4
      %s329 = int_to_ptr.vmem [resolvable:$true] %s328
      %s330 = sshll.u32 %s3, 4
      %s331 = int_to_ptr.hbm [resolvable:$true] %s330
      %336 = dma.vmem_to_hbm [thread:$0]  %s329, 384, %s331, [#allocation5], 192, 192, 12
    $region37: #{tpu_custom_call.1} parent=1 // pred_fallthru
      _
    // Predicated region
    $region38: #{tpu_custom_call.1} parent=1 // pred_check
      _
    $region39: #{tpu_custom_call.1} parent=1 // pred_check_branch
      %338 = sbr.rel (0) target = $region41
    $region40: #{tpu_custom_call.1} parent=1 // pred_region
      %340 = dma.done [#allocation5], 384
    $region41: #{tpu_custom_call.1} parent=1 // pred_fallthru
      _
    %341 = vsyncpa [#allocation4], 1
    %342 = vsyncpa [#allocation7], 1
    %343 = vsyncpa [#allocation5], 1

</llo_original>
